<compile_context>
chip_gen: v5e
topology: v5e:2x2
jax: 0.10.0
libtpu: 0.0.40
codegen_flags: <defaults>
</compile_context>

<pallas_src>
import functools

import jax
import jax.numpy as jnp
from jax.experimental import pallas as pl
from jax.experimental.pallas import tpu as pltpu


# ---------------------------------------------------------------------------
# Fused Pallas kernel: up-conv + interleave + crop/concat + pad + conv1 + conv2
# ---------------------------------------------------------------------------
def _hunet_up_block_kernel(Ho,
                           x_ref, br_ref, wup_ref, se_ref, so_ref, pc_ref,
                           w1_ref, w2_ref, o_ref, pad1_ref, pad2_ref):
    """One batch element per grid step.  Layouts (images channel-folded into lanes):
      x_ref   : (1, H,  W*Cin)           input image
      br_ref  : (1, 2H, Wb*Cb)           row-cropped bridge (column crop folded into pc)
      wup_ref : (2, W*Cin, 2W*Ccat)      up weights (ky=0/1) with column+channel placement
      se_ref/so_ref : (2H, H)            even/odd output-row scatter matrices
      pc_ref  : (Wb*Cb, 2W*Ccat)         bridge column-crop + channel-placement matrix
      w1_ref  : (3, 2W*Ccat, 2W*Cout)    conv1 banded panel per kernel row dy (h-pad folded in)
      w2_ref  : (3, 2W*Cout, 2W*Cout)    conv2 banded panel per kernel row dy
      o_ref   : (1, 2H, 2W*Cout)         lane-dense output
      pad1_ref: VMEM (2H+2, 2W*Ccat)     vertically zero-padded cat([up, crop])
      pad2_ref: VMEM (2H+2, 2W*Cout)     vertically zero-padded ReLU(conv1)
    """
    f32 = jnp.float32

    # ---- up = ConvTranspose2d(k=2, s=2): one matmul per output-row parity ky ----
    x2d = x_ref[0]                                                       # (H, W*Cin)
    u_even = jnp.dot(x2d, wup_ref[0], preferred_element_type=f32)        # rows 2i
    u_odd = jnp.dot(x2d, wup_ref[1], preferred_element_type=f32)         # rows 2i+1

    # ---- 2x2 row interleave + center-crop/concat via constant placement matmuls ----
    interior = (jnp.dot(se_ref[...], u_even, preferred_element_type=f32)
                + jnp.dot(so_ref[...], u_odd, preferred_element_type=f32)
                + jnp.dot(br_ref[0], pc_ref[...], preferred_element_type=f32))

    # ---- vertical ZeroPad(1) kept in VMEM (horizontal pad folded into band panels) ----
    z1 = jnp.zeros((1, pad1_ref.shape[1]), f32)
    pad1_ref[0:1, :] = z1
    pad1_ref[Ho + 1:Ho + 2, :] = z1
    pad1_ref[1:1 + Ho, :] = interior

    # ---- conv1 3x3 + ReLU: 3 matmuls; dx taps + channels folded into K = 2W*Ccat ----
    acc = jnp.dot(pad1_ref[0:Ho, :], w1_ref[0], preferred_element_type=f32)
    acc = acc + jnp.dot(pad1_ref[1:1 + Ho, :], w1_ref[1], preferred_element_type=f32)
    acc = acc + jnp.dot(pad1_ref[2:2 + Ho, :], w1_ref[2], preferred_element_type=f32)
    h1 = jnp.maximum(acc, 0.0)                        # ReLU on the f32 accumulator

    z2 = jnp.zeros((1, pad2_ref.shape[1]), f32)
    pad2_ref[0:1, :] = z2
    pad2_ref[Ho + 1:Ho + 2, :] = z2
    pad2_ref[1:1 + Ho, :] = h1

    # ---- conv2 3x3 + ReLU ----
    acc2 = jnp.dot(pad2_ref[0:Ho, :], w2_ref[0], preferred_element_type=f32)
    acc2 = acc2 + jnp.dot(pad2_ref[1:1 + Ho, :], w2_ref[1], preferred_element_type=f32)
    acc2 = acc2 + jnp.dot(pad2_ref[2:2 + Ho, :], w2_ref[2], preferred_element_type=f32)
    o_ref[0] = jnp.maximum(acc2, 0.0).astype(o_ref.dtype)


# ---------------------------------------------------------------------------
# Parameters + module forward
# ---------------------------------------------------------------------------
def _l2_normalize(w, axes):
    n = jnp.sqrt(jnp.sum(w * w, axis=axes, keepdims=True))
    return w / jnp.maximum(n, 1e-12)


def init_params(key, in_size, out_size):
    k1, k2, k3 = jax.random.split(key, 3)
    # HebbianConvTranspose2d weight (ConvTranspose2d layout): (Cin, Cout, 2, 2)
    w_up = jax.random.normal(k1, (in_size, out_size, 2, 2), jnp.float32) * 0.1
    # HebbianConv2d weights (Conv2d layout): (Cout, Cin, 3, 3)
    w_c1 = jax.random.normal(k2, (out_size, in_size, 3, 3), jnp.float32) * 0.1
    w_c2 = jax.random.normal(k3, (out_size, out_size, 3, 3), jnp.float32) * 0.1
    return dict(w_up=w_up, w_c1=w_c1, w_c2=w_c2)


def hunet_up_block(params, x_nchw, bridge_nchw):
    f32 = jnp.float32
    N, Cin, H, W = x_nchw.shape
    Nb, Cb, Hb, Wb = bridge_nchw.shape
    Cout = params["w_up"].shape[1]
    Ho, Wo = 2 * H, 2 * W
    Ccat = Cout + Cb
    assert Nb == N
    assert params["w_c1"].shape[1] == Ccat, "cat([up, crop]) channels must match conv1 in_size"
    dy0 = (Hb - Ho) // 2
    dx0 = (Wb - Wo) // 2

    # --- w_nrm=True: L2-normalize each output filter (in f32) ---
    wup_n = _l2_normalize(params["w_up"].astype(f32), (0, 2, 3))   # ConvT layout (Cin,Cout,2,2)
    w1_n = _l2_normalize(params["w_c1"].astype(f32), (1, 2, 3))    # Conv layout (Cout,Ccat,3,3)
    w2_n = _l2_normalize(params["w_c2"].astype(f32), (1, 2, 3))    # (Cout,Cout,3,3)

    # --- repack weights into lane-dense structured matmul panels (tiny, wrapper-side) ---
    # up:   wup_placed[ky][j*Cin+c, (2j+kx)*Ccat+o] = wup_n[c, o, ky, kx]
    jj = jnp.arange(W)
    colsel = jnp.zeros((2, W, Wo), f32)
    colsel = colsel.at[0, jj, 2 * jj].set(1.0)
    colsel = colsel.at[1, jj, 2 * jj + 1].set(1.0)
    chan_up = jnp.eye(Cout, Ccat, dtype=f32)                       # up channels -> [0, Cout)
    wup_placed = jnp.einsum("kjq,coyk,ot->yjcqt", colsel, wup_n,
                            chan_up).reshape(2, W * Cin, Wo * Ccat)

    # even/odd output-row scatter matrices (2x2 interleave of the transposed conv)
    ii = jnp.arange(H)
    se = jnp.zeros((Ho, H), f32).at[2 * ii, ii].set(1.0)
    so = jnp.zeros((Ho, H), f32).at[2 * ii + 1, ii].set(1.0)

    # bridge: column center-crop + channel placement ([Cout, Ccat)) fused into one matrix,
    # so the kernel reads the bridge rows with lane offset 0 (no unaligned lane slice).
    qq = jnp.arange(Wo)
    colpick = jnp.zeros((Wb, Wo), f32).at[dx0 + qq, qq].set(1.0)
    chan_br = jnp.concatenate([jnp.zeros((Cb, Cout), f32), jnp.eye(Cb, dtype=f32)], axis=1)
    pc = jnp.einsum("pq,bt->pbqt", colpick, chan_br).reshape(Wb * Cb, Wo * Ccat)

    # banded conv panels with the horizontal zero-pad folded in:
    #   w_big[dy][j*C + c, q*Cout + o] = w[o, c, dy, j - q + 1]  for j-q in {-1,0,1}, j in [0,Wo)
    band = jnp.zeros((3, Wo, Wo), f32)
    for dx in range(3):
        j = qq + dx - 1
        valid = (j >= 0) & (j < Wo)
        band = band.at[dx, jnp.where(valid, j, 0), qq].set(jnp.where(valid, 1.0, 0.0))
    w1_big = jnp.einsum("xjq,ocdx->djcqo", band, w1_n).reshape(3, Wo * Ccat, Wo * Cout)
    w2_big = jnp.einsum("xjq,ocdx->djcqo", band, w2_n).reshape(3, Wo * Cout, Wo * Cout)

    # --- activations into the lane-dense (Himg, Wimg*C) row-matrix layout ---
    x2d = jnp.transpose(x_nchw, (0, 2, 3, 1)).reshape(N, H, W * Cin).astype(f32)
    # row part of the center crop done here (fused with the NCHW->NHWC repack);
    # column crop handled by pc inside the kernel.
    br2d = jnp.transpose(bridge_nchw, (0, 2, 3, 1))[:, dy0:dy0 + Ho].reshape(
        N, Ho, Wb * Cb).astype(f32)

    kernel = functools.partial(_hunet_up_block_kernel, Ho)

    flops = 2 * N * (2 * H * (W * Cin) * (Wo * Ccat)        # up matmuls
                     + 2 * Ho * H * (Wo * Ccat)             # row-interleave scatter
                     + Ho * (Wb * Cb) * (Wo * Ccat)         # bridge crop/placement
                     + 3 * Ho * (Wo * Ccat) * (Wo * Cout)   # conv1
                     + 3 * Ho * (Wo * Cout) * (Wo * Cout))  # conv2
    bytes_accessed = 4 * (x2d.size + br2d.size + wup_placed.size + se.size + so.size
                          + pc.size + w1_big.size + w2_big.size + N * Ho * Wo * Cout)

    # TODO(synk): for production U-Net sizes, add a row-slab spatial grid axis with a
    # 2-row halo and re-derive block sizes for the 64 MiB VMEM of v7x.
    out2d = pl.pallas_call(
        kernel,
        out_shape=jax.ShapeDtypeStruct((N, Ho, Wo * Cout), f32),
        grid_spec=pltpu.PrefetchScalarGridSpec(
            num_scalar_prefetch=0,
            grid=(N,),
            in_specs=[
                pl.BlockSpec((1, H, W * Cin), lambda n: (n, 0, 0)),
                pl.BlockSpec((1, Ho, Wb * Cb), lambda n: (n, 0, 0)),
                pl.BlockSpec((2, W * Cin, Wo * Ccat), lambda n: (0, 0, 0)),
                pl.BlockSpec((Ho, H), lambda n: (0, 0)),
                pl.BlockSpec((Ho, H), lambda n: (0, 0)),
                pl.BlockSpec((Wb * Cb, Wo * Ccat), lambda n: (0, 0)),
                pl.BlockSpec((3, Wo * Ccat, Wo * Cout), lambda n: (0, 0, 0)),
                pl.BlockSpec((3, Wo * Cout, Wo * Cout), lambda n: (0, 0, 0)),
            ],
            out_specs=pl.BlockSpec((1, Ho, Wo * Cout), lambda n: (n, 0, 0)),
            scratch_shapes=[pltpu.VMEM((Ho + 2, Wo * Ccat), f32),
                            pltpu.VMEM((Ho + 2, Wo * Cout), f32)],
        ),
        compiler_params=pltpu.CompilerParams(
            dimension_semantics=("parallel",),          # batch rows -> megacore / both TCs
            vmem_limit_bytes=32 * 1024 * 1024),
        cost_estimate=pl.CostEstimate(flops=int(flops), transcendentals=0,
                                      bytes_accessed=int(bytes_accessed)),
    )(x2d, br2d, wup_placed, se, so, pc, w1_big, w2_big)

    # free reshape (row-major split of the minor dim) + one transpose back to NCHW
    out = out2d.reshape(N, Ho, Wo, Cout)
    return jnp.transpose(out, (0, 3, 1, 2))


# ---------------------------------------------------------------------------
# Pure-JAX/XLA reference (independent code path) for validation
# ---------------------------------------------------------------------------
def _reference_forward(params, x, bridge):
    hi = jax.lax.Precision.HIGHEST
    w_up = _l2_normalize(params["w_up"], (0, 2, 3))
    w_c1 = _l2_normalize(params["w_c1"], (1, 2, 3))
    w_c2 = _l2_normalize(params["w_c2"], (1, 2, 3))
    N, _, H, W = x.shape
    Cout = w_up.shape[1]
    # ConvTranspose2d(k=2, s=2): up[n,o,2i+ky,2j+kx] = sum_c x[n,c,i,j] * w[c,o,ky,kx]
    up = jnp.einsum("ncij,coyk->noiyjk", x, w_up,
                    precision=hi).reshape(N, Cout, 2 * H, 2 * W)
    Hb, Wb = bridge.shape[2:]
    dy0, dx0 = (Hb - 2 * H) // 2, (Wb - 2 * W) // 2
    crop = bridge[:, :, dy0:dy0 + 2 * H, dx0:dx0 + 2 * W]
    out = jnp.concatenate([up, crop], axis=1)
    dn = ("NCHW", "OIHW", "NCHW")
    out = jax.nn.relu(jax.lax.conv_general_dilated(out, w_c1, (1, 1), ((1, 1), (1, 1)),
                                                   dimension_numbers=dn, precision=hi))
    out = jax.nn.relu(jax.lax.conv_general_dilated(out, w_c2, (1, 1), ((1, 1), (1, 1)),
                                                   dimension_numbers=dn, precision=hi))
    return out


# ---------------------------------------------------------------------------
if __name__ == "__main__":
    in_size, out_size = 8, 4          # bridge channels = in_size - out_size = 4
    N, H, W = 2, 8, 8                 # x spatial; up output is 16x16
    Hb = Wb = 20                      # bridge spatial, center-cropped to 16x16

    key = jax.random.PRNGKey(0)
    kx, kb, kp = jax.random.split(key, 3)
    x = jax.random.normal(kx, (N, in_size, H, W), jnp.float32)
    bridge = jax.random.normal(kb, (N, in_size - out_size, Hb, Wb), jnp.float32)
    params = init_params(kp, in_size, out_size)

    out = jax.jit(hunet_up_block)(params, x, bridge)
    out = jax.block_until_ready(out)
    assert out.shape == (N, out_size, 2 * H, 2 * W)
    assert bool(jnp.all(jnp.isfinite(out)))

    ref = jax.jit(_reference_forward)(params, x, bridge)
    ref = jax.block_until_ready(ref)
    # tolerance accounts for MXU default (bf16-pass) matmul precision inside the kernel
    assert bool(jnp.allclose(out, ref, rtol=2e-2, atol=2e-2)), \
        float(jnp.max(jnp.abs(out - ref)))

    # TODO(synk): Hebbian plasticity (swta/hpca updates, k, contrast, alpha) is a
    # training-time rule with no forward-pass effect; only w_nrm + act are modeled here.
    print("KERNEL_OK")
</pallas_src>

<mosaic_0001>
module attributes {stable_mosaic.version = 11 : i64} {
  func.func @_hunet_up_block_kernel(%arg0: i32, %arg1: memref<1x8x64xf32, #tpu.memory_space<vmem>>, %arg2: memref<1x16x80xf32, #tpu.memory_space<vmem>>, %arg3: memref<2x64x128xf32, #tpu.memory_space<vmem>>, %arg4: memref<16x8xf32, #tpu.memory_space<vmem>>, %arg5: memref<16x8xf32, #tpu.memory_space<vmem>>, %arg6: memref<80x128xf32, #tpu.memory_space<vmem>>, %arg7: memref<3x128x64xf32, #tpu.memory_space<vmem>>, %arg8: memref<3x64x64xf32, #tpu.memory_space<vmem>>, %arg9: memref<1x16x64xf32, #tpu.memory_space<vmem>>, %arg10: memref<18x128xf32, #tpu.memory_space<vmem>>, %arg11: memref<18x64xf32, #tpu.memory_space<vmem>>) attributes {dimension_semantics = [#tpu.dimension_semantics<parallel>], iteration_bounds = array<i64: 2>, scalar_prefetch = 0 : i64, scratch_operands = 2 : i64, tpu.core_type = #tpu.core_type<tc>, window_params = [{transform_indices = @transform_0, window_bounds = array<i64: 1, 8, 64>}, {transform_indices = @transform_1, window_bounds = array<i64: 1, 16, 80>}, {pipeline_mode = #tpu.pipeline_mode<synchronous>, transform_indices = @transform_2, window_bounds = array<i64: 2, 64, 128>}, {pipeline_mode = #tpu.pipeline_mode<synchronous>, transform_indices = @transform_3, window_bounds = array<i64: 16, 8>}, {pipeline_mode = #tpu.pipeline_mode<synchronous>, transform_indices = @transform_4, window_bounds = array<i64: 16, 8>}, {pipeline_mode = #tpu.pipeline_mode<synchronous>, transform_indices = @transform_5, window_bounds = array<i64: 80, 128>}, {pipeline_mode = #tpu.pipeline_mode<synchronous>, transform_indices = @transform_6, window_bounds = array<i64: 3, 128, 64>}, {pipeline_mode = #tpu.pipeline_mode<synchronous>, transform_indices = @transform_7, window_bounds = array<i64: 3, 64, 64>}, {transform_indices = @transform_8, window_bounds = array<i64: 1, 16, 64>}]} {
    %c0 = arith.constant 0 : index
    %c0_0 = arith.constant 0 : index
    %c0_1 = arith.constant 0 : index
    %0 = vector.load %arg1[%c0, %c0_0, %c0_1] : memref<1x8x64xf32, #tpu.memory_space<vmem>>, vector<1x8x64xf32>
    %1 = vector.shape_cast %0 : vector<1x8x64xf32> to vector<8x64xf32>
    %c0_2 = arith.constant 0 : index
    %c0_3 = arith.constant 0 : index
    %c0_4 = arith.constant 0 : index
    %2 = vector.load %arg3[%c0_2, %c0_3, %c0_4] : memref<2x64x128xf32, #tpu.memory_space<vmem>>, vector<1x64x128xf32>
    %3 = vector.shape_cast %2 : vector<1x64x128xf32> to vector<64x128xf32>
    %cst = arith.constant dense<0.000000e+00> : vector<8x128xf32>
    %4 = tpu.matmul %1, %3, %cst {dimension_numbers = #tpu.dot_dimension_numbers<[1], [0], [0], [1], [0, 0, 1, 1], [], []>} : vector<8x64xf32>, vector<64x128xf32>, vector<8x128xf32> -> vector<8x128xf32>
    %c1 = arith.constant 1 : index
    %c0_5 = arith.constant 0 : index
    %c0_6 = arith.constant 0 : index
    %5 = vector.load %arg3[%c1, %c0_5, %c0_6] : memref<2x64x128xf32, #tpu.memory_space<vmem>>, vector<1x64x128xf32>
    %6 = vector.shape_cast %5 : vector<1x64x128xf32> to vector<64x128xf32>
    %cst_7 = arith.constant dense<0.000000e+00> : vector<8x128xf32>
    %7 = tpu.matmul %1, %6, %cst_7 {dimension_numbers = #tpu.dot_dimension_numbers<[1], [0], [0], [1], [0, 0, 1, 1], [], []>} : vector<8x64xf32>, vector<64x128xf32>, vector<8x128xf32> -> vector<8x128xf32>
    %c0_8 = arith.constant 0 : index
    %c0_9 = arith.constant 0 : index
    %8 = vector.load %arg4[%c0_8, %c0_9] : memref<16x8xf32, #tpu.memory_space<vmem>>, vector<16x8xf32>
    %cst_10 = arith.constant dense<0.000000e+00> : vector<16x128xf32>
    %9 = tpu.matmul %8, %4, %cst_10 {dimension_numbers = #tpu.dot_dimension_numbers<[1], [0], [0], [1], [0, 0, 1, 1], [], []>} : vector<16x8xf32>, vector<8x128xf32>, vector<16x128xf32> -> vector<16x128xf32>
    %c0_11 = arith.constant 0 : index
    %c0_12 = arith.constant 0 : index
    %10 = vector.load %arg5[%c0_11, %c0_12] : memref<16x8xf32, #tpu.memory_space<vmem>>, vector<16x8xf32>
    %cst_13 = arith.constant dense<0.000000e+00> : vector<16x128xf32>
    %11 = tpu.matmul %10, %7, %cst_13 {dimension_numbers = #tpu.dot_dimension_numbers<[1], [0], [0], [1], [0, 0, 1, 1], [], []>} : vector<16x8xf32>, vector<8x128xf32>, vector<16x128xf32> -> vector<16x128xf32>
    %12 = arith.addf %9, %11 : vector<16x128xf32>
    %c0_14 = arith.constant 0 : index
    %c0_15 = arith.constant 0 : index
    %c0_16 = arith.constant 0 : index
    %13 = vector.load %arg2[%c0_14, %c0_15, %c0_16] : memref<1x16x80xf32, #tpu.memory_space<vmem>>, vector<1x16x80xf32>
    %14 = vector.shape_cast %13 : vector<1x16x80xf32> to vector<16x80xf32>
    %c0_17 = arith.constant 0 : index
    %c0_18 = arith.constant 0 : index
    %15 = vector.load %arg6[%c0_17, %c0_18] : memref<80x128xf32, #tpu.memory_space<vmem>>, vector<80x128xf32>
    %cst_19 = arith.constant dense<0.000000e+00> : vector<16x128xf32>
    %16 = tpu.matmul %14, %15, %cst_19 {dimension_numbers = #tpu.dot_dimension_numbers<[1], [0], [0], [1], [0, 0, 1, 1], [], []>} : vector<16x80xf32>, vector<80x128xf32>, vector<16x128xf32> -> vector<16x128xf32>
    %17 = arith.addf %12, %16 : vector<16x128xf32>
    %cst_20 = arith.constant 0.000000e+00 : f32
    %18 = vector.broadcast %cst_20 : f32 to vector<1x128xf32>
    %c0_21 = arith.constant 0 : index
    %c0_22 = arith.constant 0 : index
    %19 = vector.load %arg10[%c0_21, %c0_22] : memref<18x128xf32, #tpu.memory_space<vmem>>, vector<1x128xf32>
    tpu.vector_store %arg10[%c0_21, %c0_22], %18 {strides = array<i32>} : memref<18x128xf32, #tpu.memory_space<vmem>>, vector<1x128xf32>,
    %c17 = arith.constant 17 : index
    %c0_23 = arith.constant 0 : index
    %20 = vector.load %arg10[%c17, %c0_23] : memref<18x128xf32, #tpu.memory_space<vmem>>, vector<1x128xf32>
    tpu.vector_store %arg10[%c17, %c0_23], %18 {strides = array<i32>} : memref<18x128xf32, #tpu.memory_space<vmem>>, vector<1x128xf32>,
    %c1_24 = arith.constant 1 : index
    %c0_25 = arith.constant 0 : index
    %21 = vector.load %arg10[%c1_24, %c0_25] : memref<18x128xf32, #tpu.memory_space<vmem>>, vector<16x128xf32>
    tpu.vector_store %arg10[%c1_24, %c0_25], %17 {strides = array<i32>} : memref<18x128xf32, #tpu.memory_space<vmem>>, vector<16x128xf32>,
    %c0_26 = arith.constant 0 : index
    %c0_27 = arith.constant 0 : index
    %22 = vector.load %arg10[%c0_26, %c0_27] : memref<18x128xf32, #tpu.memory_space<vmem>>, vector<16x128xf32>
    %c0_28 = arith.constant 0 : index
    %c0_29 = arith.constant 0 : index
    %c0_30 = arith.constant 0 : index
    %23 = vector.load %arg7[%c0_28, %c0_29, %c0_30] : memref<3x128x64xf32, #tpu.memory_space<vmem>>, vector<1x128x64xf32>
    %24 = vector.shape_cast %23 : vector<1x128x64xf32> to vector<128x64xf32>
    %cst_31 = arith.constant dense<0.000000e+00> : vector<16x64xf32>
    %25 = tpu.matmul %22, %24, %cst_31 {dimension_numbers = #tpu.dot_dimension_numbers<[1], [0], [0], [1], [0, 0, 1, 1], [], []>} : vector<16x128xf32>, vector<128x64xf32>, vector<16x64xf32> -> vector<16x64xf32>
    %c1_32 = arith.constant 1 : index
    %c0_33 = arith.constant 0 : index
    %26 = vector.load %arg10[%c1_32, %c0_33] : memref<18x128xf32, #tpu.memory_space<vmem>>, vector<16x128xf32>
    %c1_34 = arith.constant 1 : index
    %c0_35 = arith.constant 0 : index
    %c0_36 = arith.constant 0 : index
    %27 = vector.load %arg7[%c1_34, %c0_35, %c0_36] : memref<3x128x64xf32, #tpu.memory_space<vmem>>, vector<1x128x64xf32>
    %28 = vector.shape_cast %27 : vector<1x128x64xf32> to vector<128x64xf32>
    %cst_37 = arith.constant dense<0.000000e+00> : vector<16x64xf32>
    %29 = tpu.matmul %26, %28, %cst_37 {dimension_numbers = #tpu.dot_dimension_numbers<[1], [0], [0], [1], [0, 0, 1, 1], [], []>} : vector<16x128xf32>, vector<128x64xf32>, vector<16x64xf32> -> vector<16x64xf32>
    %30 = arith.addf %25, %29 : vector<16x64xf32>
    %c2 = arith.constant 2 : index
    %c0_38 = arith.constant 0 : index
    %31 = vector.load %arg10[%c2, %c0_38] : memref<18x128xf32, #tpu.memory_space<vmem>>, vector<16x128xf32>
    %c2_39 = arith.constant 2 : index
    %c0_40 = arith.constant 0 : index
    %c0_41 = arith.constant 0 : index
    %32 = vector.load %arg7[%c2_39, %c0_40, %c0_41] : memref<3x128x64xf32, #tpu.memory_space<vmem>>, vector<1x128x64xf32>
    %33 = vector.shape_cast %32 : vector<1x128x64xf32> to vector<128x64xf32>
    %cst_42 = arith.constant dense<0.000000e+00> : vector<16x64xf32>
    %34 = tpu.matmul %31, %33, %cst_42 {dimension_numbers = #tpu.dot_dimension_numbers<[1], [0], [0], [1], [0, 0, 1, 1], [], []>} : vector<16x128xf32>, vector<128x64xf32>, vector<16x64xf32> -> vector<16x64xf32>
    %35 = arith.addf %30, %34 : vector<16x64xf32>
    %cst_43 = arith.constant 0.000000e+00 : f32
    %36 = vector.broadcast %cst_43 : f32 to vector<16x64xf32>
    %37 = arith.maximumf %35, %36 : vector<16x64xf32>
    %cst_44 = arith.constant 0.000000e+00 : f32
    %38 = vector.broadcast %cst_44 : f32 to vector<1x64xf32>
    %c0_45 = arith.constant 0 : index
    %c0_46 = arith.constant 0 : index
    %39 = vector.load %arg11[%c0_45, %c0_46] : memref<18x64xf32, #tpu.memory_space<vmem>>, vector<1x64xf32>
    tpu.vector_store %arg11[%c0_45, %c0_46], %38 {strides = array<i32>} : memref<18x64xf32, #tpu.memory_space<vmem>>, vector<1x64xf32>,
    %c17_47 = arith.constant 17 : index
    %c0_48 = arith.constant 0 : index
    %40 = vector.load %arg11[%c17_47, %c0_48] : memref<18x64xf32, #tpu.memory_space<vmem>>, vector<1x64xf32>
    tpu.vector_store %arg11[%c17_47, %c0_48], %38 {strides = array<i32>} : memref<18x64xf32, #tpu.memory_space<vmem>>, vector<1x64xf32>,
    %c1_49 = arith.constant 1 : index
    %c0_50 = arith.constant 0 : index
    %41 = vector.load %arg11[%c1_49, %c0_50] : memref<18x64xf32, #tpu.memory_space<vmem>>, vector<16x64xf32>
    tpu.vector_store %arg11[%c1_49, %c0_50], %37 {strides = array<i32>} : memref<18x64xf32, #tpu.memory_space<vmem>>, vector<16x64xf32>,
    %c0_51 = arith.constant 0 : index
    %c0_52 = arith.constant 0 : index
    %42 = vector.load %arg11[%c0_51, %c0_52] : memref<18x64xf32, #tpu.memory_space<vmem>>, vector<16x64xf32>
    %c0_53 = arith.constant 0 : index
    %c0_54 = arith.constant 0 : index
    %c0_55 = arith.constant 0 : index
    %43 = vector.load %arg8[%c0_53, %c0_54, %c0_55] : memref<3x64x64xf32, #tpu.memory_space<vmem>>, vector<1x64x64xf32>
    %44 = vector.shape_cast %43 : vector<1x64x64xf32> to vector<64x64xf32>
    %cst_56 = arith.constant dense<0.000000e+00> : vector<16x64xf32>
    %45 = tpu.matmul %42, %44, %cst_56 {dimension_numbers = #tpu.dot_dimension_numbers<[1], [0], [0], [1], [0, 0, 1, 1], [], []>} : vector<16x64xf32>, vector<64x64xf32>, vector<16x64xf32> -> vector<16x64xf32>
    %c1_57 = arith.constant 1 : index
    %c0_58 = arith.constant 0 : index
    %46 = vector.load %arg11[%c1_57, %c0_58] : memref<18x64xf32, #tpu.memory_space<vmem>>, vector<16x64xf32>
    %c1_59 = arith.constant 1 : index
    %c0_60 = arith.constant 0 : index
    %c0_61 = arith.constant 0 : index
    %47 = vector.load %arg8[%c1_59, %c0_60, %c0_61] : memref<3x64x64xf32, #tpu.memory_space<vmem>>, vector<1x64x64xf32>
    %48 = vector.shape_cast %47 : vector<1x64x64xf32> to vector<64x64xf32>
    %cst_62 = arith.constant dense<0.000000e+00> : vector<16x64xf32>
    %49 = tpu.matmul %46, %48, %cst_62 {dimension_numbers = #tpu.dot_dimension_numbers<[1], [0], [0], [1], [0, 0, 1, 1], [], []>} : vector<16x64xf32>, vector<64x64xf32>, vector<16x64xf32> -> vector<16x64xf32>
    %50 = arith.addf %45, %49 : vector<16x64xf32>
    %c2_63 = arith.constant 2 : index
    %c0_64 = arith.constant 0 : index
    %51 = vector.load %arg11[%c2_63, %c0_64] : memref<18x64xf32, #tpu.memory_space<vmem>>, vector<16x64xf32>
    %c2_65 = arith.constant 2 : index
    %c0_66 = arith.constant 0 : index
    %c0_67 = arith.constant 0 : index
    %52 = vector.load %arg8[%c2_65, %c0_66, %c0_67] : memref<3x64x64xf32, #tpu.memory_space<vmem>>, vector<1x64x64xf32>
    %53 = vector.shape_cast %52 : vector<1x64x64xf32> to vector<64x64xf32>
    %cst_68 = arith.constant dense<0.000000e+00> : vector<16x64xf32>
    %54 = tpu.matmul %51, %53, %cst_68 {dimension_numbers = #tpu.dot_dimension_numbers<[1], [0], [0], [1], [0, 0, 1, 1], [], []>} : vector<16x64xf32>, vector<64x64xf32>, vector<16x64xf32> -> vector<16x64xf32>
    %55 = arith.addf %50, %54 : vector<16x64xf32>
    %cst_69 = arith.constant 0.000000e+00 : f32
    %56 = vector.broadcast %cst_69 : f32 to vector<16x64xf32>
    %57 = arith.maximumf %55, %56 : vector<16x64xf32>
    %c0_70 = arith.constant 0 : index
    %c0_71 = arith.constant 0 : index
    %c0_72 = arith.constant 0 : index
    %58 = vector.load %arg9[%c0_70, %c0_71, %c0_72] : memref<1x16x64xf32, #tpu.memory_space<vmem>>, vector<1x16x64xf32>
    %59 = vector.shape_cast %58 : vector<1x16x64xf32> to vector<16x64xf32>
    %60 = vector.shape_cast %57 : vector<16x64xf32> to vector<1x16x64xf32>
    tpu.vector_store %arg9[%c0_70, %c0_71, %c0_72], %60 {strides = array<i32>} : memref<1x16x64xf32, #tpu.memory_space<vmem>>, vector<1x16x64xf32>,
    return
  }
  func.func @transform_0(%arg0: i32) -> (i32, i32, i32) {
    %c0_i32 = arith.constant 0 : i32
    %c0_i32_0 = arith.constant 0 : i32
    %c0_i32_1 = arith.constant 0 : i32
    return %arg0, %c0_i32, %c0_i32_0 : i32, i32, i32
  }
  func.func @transform_1(%arg0: i32) -> (i32, i32, i32) {
    %c0_i32 = arith.constant 0 : i32
    %c0_i32_0 = arith.constant 0 : i32
    %c0_i32_1 = arith.constant 0 : i32
    return %arg0, %c0_i32, %c0_i32_0 : i32, i32, i32
  }
  func.func @transform_2(%arg0: i32) -> (i32, i32, i32) {
    %c0_i32 = arith.constant 0 : i32
    %c0_i32_0 = arith.constant 0 : i32
    %c0_i32_1 = arith.constant 0 : i32
    %c0_i32_2 = arith.constant 0 : i32
    return %c0_i32, %c0_i32_0, %c0_i32_1 : i32, i32, i32
  }
  func.func @transform_3(%arg0: i32) -> (i32, i32) {
    %c0_i32 = arith.constant 0 : i32
    %c0_i32_0 = arith.constant 0 : i32
    %c0_i32_1 = arith.constant 0 : i32
    return %c0_i32, %c0_i32_0 : i32, i32
  }
  func.func @transform_4(%arg0: i32) -> (i32, i32) {
    %c0_i32 = arith.constant 0 : i32
    %c0_i32_0 = arith.constant 0 : i32
    %c0_i32_1 = arith.constant 0 : i32
    return %c0_i32, %c0_i32_0 : i32, i32
  }
  func.func @transform_5(%arg0: i32) -> (i32, i32) {
    %c0_i32 = arith.constant 0 : i32
    %c0_i32_0 = arith.constant 0 : i32
    %c0_i32_1 = arith.constant 0 : i32
    return %c0_i32, %c0_i32_0 : i32, i32
  }
  func.func @transform_6(%arg0: i32) -> (i32, i32, i32) {
    %c0_i32 = arith.constant 0 : i32
    %c0_i32_0 = arith.constant 0 : i32
    %c0_i32_1 = arith.constant 0 : i32
    %c0_i32_2 = arith.constant 0 : i32
    return %c0_i32, %c0_i32_0, %c0_i32_1 : i32, i32, i32
  }
  func.func @transform_7(%arg0: i32) -> (i32, i32, i32) {
    %c0_i32 = arith.constant 0 : i32
    %c0_i32_0 = arith.constant 0 : i32
    %c0_i32_1 = arith.constant 0 : i32
    %c0_i32_2 = arith.constant 0 : i32
    return %c0_i32, %c0_i32_0, %c0_i32_1 : i32, i32, i32
  }
  func.func @transform_8(%arg0: i32) -> (i32, i32, i32) {
    %c0_i32 = arith.constant 0 : i32
    %c0_i32_0 = arith.constant 0 : i32
    %c0_i32_1 = arith.constant 0 : i32
    return %arg0, %c0_i32, %c0_i32_0 : i32, i32, i32
  }
}

</mosaic_0001>

<llo_original>
// kernel: hunet_up_block.1
$region0: #{hunet_up_block.1}
  #allocation0 [shape = 'u32[]', space=smem, size = 0x4, offset = 0x4, fixed_abs, tag = 'smem constant byte address 0x4 - core index']
  #allocation1 [shape = 'u32[72,128]{1,0:T(1,128)}', space=vmem, size = 0x9000, scoped, tag = 'internal scratch']
  #allocation2 [shape = 'f32[18,128]{1,0:T(8,128)}', space=vmem, size = 0x3000, scoped, tag = 'scratch operand']
  #allocation3 [shape = 'f32[18,64]{1,0:T(8,128)}', space=vmem, size = 0x3000, scoped, tag = 'scratch operand']
  %s0 = inlined_call_operand.vmem [shape: f32[2,8,64], index: 0, kind: input, shape index: {}]
  %s1 = inlined_call_operand.vmem [shape: f32[2,16,80], index: 1, kind: input, shape index: {}]
  %s2 = inlined_call_operand.vmem [shape: f32[2,64,128], index: 2, kind: input, shape index: {}]
  %s3 = inlined_call_operand.vmem [shape: f32[16,8], index: 3, kind: input, shape index: {}]
  %s4 = inlined_call_operand.vmem [shape: f32[16,8], index: 4, kind: input, shape index: {}]
  %s5 = inlined_call_operand.vmem [shape: f32[80,128], index: 5, kind: input, shape index: {}]
  %s6 = inlined_call_operand.vmem [shape: f32[3,128,64], index: 6, kind: input, shape index: {}]
  %s7 = inlined_call_operand.vmem [shape: f32[3,64,64], index: 7, kind: input, shape index: {}]
  %s8 = inlined_call_operand.vmem [shape: f32[2,16,64], index: 8, kind: output, shape index: {}]
  %s9 = sld [smem:[#allocation0]]
  $region65: #{hunet_up_block.1} parent=0
    _
  %s11 = ssub.s32 1, %s9
  %s12 = scalar_select 0, %s11, %s9
  loop: start=0, step=1, limit=4
  $region2: #{hunet_up_block.1} parent=0 // loop_pre_header
    _
  $region3: #{hunet_up_block.1} parent=0 // loop_header
    %s14 = sphi 0, %s18
    %p15 = scmp.ge.s32.totalorder %s14, 4
    %s24 = sphi 0, %s26
    %s27 = sphi 0, %s24
    %s28 = sphi 0, %s27
    %s44 = sphi 0, %s28
    %s50 = sphi 0, %s52
    %s53 = sphi 0, %s50
    %s54 = sphi 0, %s53
    %s70 = sphi 0, %s54
    %s74 = sphi 0, %s74
    %s76 = sphi 0, %s74
    %s77 = sphi 0, %s76
    %s91 = sphi 0, %s77
    %s95 = sphi 0, %s95
    %s97 = sphi 0, %s95
    %s98 = sphi 0, %s97
    %s112 = sphi 0, %s98
    %s116 = sphi 0, %s116
    %s118 = sphi 0, %s116
    %s119 = sphi 0, %s118
    %s133 = sphi 0, %s119
    %s137 = sphi 0, %s137
    %s139 = sphi 0, %s137
    %s140 = sphi 0, %s139
    %s154 = sphi 0, %s140
    %s158 = sphi 0, %s158
    %s160 = sphi 0, %s158
    %s161 = sphi 0, %s160
    %s175 = sphi 0, %s161
    %s179 = sphi 0, %s179
    %s181 = sphi 0, %s179
    %s182 = sphi 0, %s181
    %s196 = sphi 0, %s182
    %s202 = sphi 0, %s204
    %s205 = sphi 0, %s202
    %s206 = sphi 0, %s205
    %s222 = sphi 0, %s206
  $region4: #{hunet_up_block.1} parent=0 // loop_header_branch
    %17 = sbr.rel (%p15) target = $region8
  $region5: #{hunet_up_block.1} parent=0 // loop_body
    %s19 = ssub.s32 %s14, 1
    %s20 = ssub.s32 %s14, 2
    %s21 = sadd.s32 %s14, 1
    %s22 = ssub.s32 %s14, %s21
    %p23 = scmp.eq.s32.totalorder %s22, 0
    %s25 = sadd.s32 %s24, 1
    %s26 = scalar_select %p23, %s24, %s25
    %p29 = pneg %p23
    %p30 = scmp.eq.s32.totalorder %s14, 1
    %p31 = por %p29, %p30
    %p32 = scmp.ne.s32.totalorder %s24, %s27
    %p33 = scmp.eq.s32.totalorder %s14, 0
    %p34 = por %p32, %p33
    %p35 = scmp.ne.s32.totalorder %s24, %s27
    %p36 = scmp.eq.s32.totalorder %s19, 1
    %p37 = por %p35, %p36
    %p38 = scmp.ne.s32.totalorder %s27, %s28
    %p39 = scmp.eq.s32.totalorder %s19, 0
    %p40 = por %p38, %p39
    %p41 = scmp.ne.s32.totalorder %s27, %s28
    %p42 = scmp.eq.s32.totalorder %s20, 1
    %p43 = por %p41, %p42
    %p45 = scmp.ne.s32.totalorder %s28, %s44
    %p46 = scmp.eq.s32.totalorder %s20, 0
    %p47 = por %p45, %p46
    %s48 = ssub.s32 %s14, %s21
    %p49 = scmp.eq.s32.totalorder %s48, 0
    %s51 = sadd.s32 %s50, 1
    %s52 = scalar_select %p49, %s50, %s51
    %p55 = pneg %p49
    %p56 = scmp.eq.s32.totalorder %s14, 1
    %p57 = por %p55, %p56
    %p58 = scmp.ne.s32.totalorder %s50, %s53
    %p59 = scmp.eq.s32.totalorder %s14, 0
    %p60 = por %p58, %p59
    %p61 = scmp.ne.s32.totalorder %s50, %s53
    %p62 = scmp.eq.s32.totalorder %s19, 1
    %p63 = por %p61, %p62
    %p64 = scmp.ne.s32.totalorder %s53, %s54
    %p65 = scmp.eq.s32.totalorder %s19, 0
    %p66 = por %p64, %p65
    %p67 = scmp.ne.s32.totalorder %s53, %s54
    %p68 = scmp.eq.s32.totalorder %s20, 1
    %p69 = por %p67, %p68
    %p71 = scmp.ne.s32.totalorder %s54, %s70
    %p72 = scmp.eq.s32.totalorder %s20, 0
    %p73 = por %p71, %p72
    %s75 = sadd.s32 %s74, 1
    %p78 = scmp.eq.s32.totalorder %s14, 1
    %p79 = scmp.ne.s32.totalorder %s74, %s76
    %p80 = scmp.eq.s32.totalorder %s14, 0
    %p81 = por %p79, %p80
    %p82 = scmp.ne.s32.totalorder %s74, %s76
    %p83 = scmp.eq.s32.totalorder %s19, 1
    %p84 = por %p82, %p83
    %p85 = scmp.ne.s32.totalorder %s76, %s77
    %p86 = scmp.eq.s32.totalorder %s19, 0
    %p87 = por %p85, %p86
    %p88 = scmp.ne.s32.totalorder %s76, %s77
    %p89 = scmp.eq.s32.totalorder %s20, 1
    %p90 = por %p88, %p89
    %p92 = scmp.ne.s32.totalorder %s77, %s91
    %p93 = scmp.eq.s32.totalorder %s20, 0
    %p94 = por %p92, %p93
    %s96 = sadd.s32 %s95, 1
    %p99 = scmp.eq.s32.totalorder %s14, 1
    %p100 = scmp.ne.s32.totalorder %s95, %s97
    %p101 = scmp.eq.s32.totalorder %s14, 0
    %p102 = por %p100, %p101
    %p103 = scmp.ne.s32.totalorder %s95, %s97
    %p104 = scmp.eq.s32.totalorder %s19, 1
    %p105 = por %p103, %p104
    %p106 = scmp.ne.s32.totalorder %s97, %s98
    %p107 = scmp.eq.s32.totalorder %s19, 0
    %p108 = por %p106, %p107
    %p109 = scmp.ne.s32.totalorder %s97, %s98
    %p110 = scmp.eq.s32.totalorder %s20, 1
    %p111 = por %p109, %p110
    %p113 = scmp.ne.s32.totalorder %s98, %s112
    %p114 = scmp.eq.s32.totalorder %s20, 0
    %p115 = por %p113, %p114
    %s117 = sadd.s32 %s116, 1
    %p120 = scmp.eq.s32.totalorder %s14, 1
    %p121 = scmp.ne.s32.totalorder %s116, %s118
    %p122 = scmp.eq.s32.totalorder %s14, 0
    %p123 = por %p121, %p122
    %p124 = scmp.ne.s32.totalorder %s116, %s118
    %p125 = scmp.eq.s32.totalorder %s19, 1
    %p126 = por %p124, %p125
    %p127 = scmp.ne.s32.totalorder %s118, %s119
    %p128 = scmp.eq.s32.totalorder %s19, 0
    %p129 = por %p127, %p128
    %p130 = scmp.ne.s32.totalorder %s118, %s119
    %p131 = scmp.eq.s32.totalorder %s20, 1
    %p132 = por %p130, %p131
    %p134 = scmp.ne.s32.totalorder %s119, %s133
    %p135 = scmp.eq.s32.totalorder %s20, 0
    %p136 = por %p134, %p135
    %s138 = sadd.s32 %s137, 1
    %p141 = scmp.eq.s32.totalorder %s14, 1
    %p142 = scmp.ne.s32.totalorder %s137, %s139
    %p143 = scmp.eq.s32.totalorder %s14, 0
    %p144 = por %p142, %p143
    %p145 = scmp.ne.s32.totalorder %s137, %s139
    %p146 = scmp.eq.s32.totalorder %s19, 1
    %p147 = por %p145, %p146
    %p148 = scmp.ne.s32.totalorder %s139, %s140
    %p149 = scmp.eq.s32.totalorder %s19, 0
    %p150 = por %p148, %p149
    %p151 = scmp.ne.s32.totalorder %s139, %s140
    %p152 = scmp.eq.s32.totalorder %s20, 1
    %p153 = por %p151, %p152
    %p155 = scmp.ne.s32.totalorder %s140, %s154
    %p156 = scmp.eq.s32.totalorder %s20, 0
    %p157 = por %p155, %p156
    %s159 = sadd.s32 %s158, 1
    %p162 = scmp.eq.s32.totalorder %s14, 1
    %p163 = scmp.ne.s32.totalorder %s158, %s160
    %p164 = scmp.eq.s32.totalorder %s14, 0
    %p165 = por %p163, %p164
    %p166 = scmp.ne.s32.totalorder %s158, %s160
    %p167 = scmp.eq.s32.totalorder %s19, 1
    %p168 = por %p166, %p167
    %p169 = scmp.ne.s32.totalorder %s160, %s161
    %p170 = scmp.eq.s32.totalorder %s19, 0
    %p171 = por %p169, %p170
    %p172 = scmp.ne.s32.totalorder %s160, %s161
    %p173 = scmp.eq.s32.totalorder %s20, 1
    %p174 = por %p172, %p173
    %p176 = scmp.ne.s32.totalorder %s161, %s175
    %p177 = scmp.eq.s32.totalorder %s20, 0
    %p178 = por %p176, %p177
    %s180 = sadd.s32 %s179, 1
    %p183 = scmp.eq.s32.totalorder %s14, 1
    %p184 = scmp.ne.s32.totalorder %s179, %s181
    %p185 = scmp.eq.s32.totalorder %s14, 0
    %p186 = por %p184, %p185
    %p187 = scmp.ne.s32.totalorder %s179, %s181
    %p188 = scmp.eq.s32.totalorder %s19, 1
    %p189 = por %p187, %p188
    %p190 = scmp.ne.s32.totalorder %s181, %s182
    %p191 = scmp.eq.s32.totalorder %s19, 0
    %p192 = por %p190, %p191
    %p193 = scmp.ne.s32.totalorder %s181, %s182
    %p194 = scmp.eq.s32.totalorder %s20, 1
    %p195 = por %p193, %p194
    %p197 = scmp.ne.s32.totalorder %s182, %s196
    %p198 = scmp.eq.s32.totalorder %s20, 0
    %p199 = por %p197, %p198
    %s200 = ssub.s32 %s14, %s21
    %p201 = scmp.eq.s32.totalorder %s200, 0
    %s203 = sadd.s32 %s202, 1
    %s204 = scalar_select %p201, %s202, %s203
    %p207 = pneg %p201
    %p208 = scmp.eq.s32.totalorder %s14, 1
    %p209 = por %p207, %p208
    %p210 = scmp.ne.s32.totalorder %s202, %s205
    %p211 = scmp.eq.s32.totalorder %s14, 0
    %p212 = por %p210, %p211
    %p213 = scmp.ne.s32.totalorder %s202, %s205
    %p214 = scmp.eq.s32.totalorder %s19, 1
    %p215 = por %p213, %p214
    %p216 = scmp.ne.s32.totalorder %s205, %s206
    %p217 = scmp.eq.s32.totalorder %s19, 0
    %p218 = por %p216, %p217
    %p219 = scmp.ne.s32.totalorder %s205, %s206
    %p220 = scmp.eq.s32.totalorder %s20, 1
    %p221 = por %p219, %p220
    %p223 = scmp.ne.s32.totalorder %s206, %s222
    %p224 = scmp.eq.s32.totalorder %s20, 0
    %p225 = por %p223, %p224
    %p226 = scmp.le.s32.totalorder 1, %s14
    %p227 = scmp.lt.s32.totalorder %s14, 3
    %p228 = pnand %p226, %p227
    %p229 = pneg %p228
    // Predicated region
    $region9: #{hunet_up_block.1} parent=5 // pred_check
      _
    $region10: #{hunet_up_block.1} parent=5 // pred_check_branch
      %231 = sbr.rel (%p228) target = $region12
    $region11: #{hunet_up_block.1} parent=5 // pred_region
      %s232 = ssub.s32 %s14, 1
      // Predicated region
      $region13: #{hunet_up_block.1} parent=11 // pred_check
        %p233 = pneg %p87
      $region14: #{hunet_up_block.1} parent=11 // pred_check_branch
        %235 = sbr.rel (%p233) target = $region16
      $region15: #{hunet_up_block.1} parent=11 // pred_region
        _
      $region16: #{hunet_up_block.1} parent=11 // pred_fallthru
        _
      // Predicated region
      $region17: #{hunet_up_block.1} parent=11 // pred_check
        %p236 = pneg %p108
      $region18: #{hunet_up_block.1} parent=11 // pred_check_branch
        %238 = sbr.rel (%p236) target = $region20
      $region19: #{hunet_up_block.1} parent=11 // pred_region
        _
      $region20: #{hunet_up_block.1} parent=11 // pred_fallthru
        _
      // Predicated region
      $region21: #{hunet_up_block.1} parent=11 // pred_check
        %p239 = pneg %p129
      $region22: #{hunet_up_block.1} parent=11 // pred_check_branch
        %241 = sbr.rel (%p239) target = $region24
      $region23: #{hunet_up_block.1} parent=11 // pred_region
        _
      $region24: #{hunet_up_block.1} parent=11 // pred_fallthru
        _
      // Predicated region
      $region25: #{hunet_up_block.1} parent=11 // pred_check
        %p242 = pneg %p150
      $region26: #{hunet_up_block.1} parent=11 // pred_check_branch
        %244 = sbr.rel (%p242) target = $region28
      $region27: #{hunet_up_block.1} parent=11 // pred_region
        _
      $region28: #{hunet_up_block.1} parent=11 // pred_fallthru
        _
      // Predicated region
      $region29: #{hunet_up_block.1} parent=11 // pred_check
        %p245 = pneg %p171
      $region30: #{hunet_up_block.1} parent=11 // pred_check_branch
        %247 = sbr.rel (%p245) target = $region32
      $region31: #{hunet_up_block.1} parent=11 // pred_region
        _
      $region32: #{hunet_up_block.1} parent=11 // pred_fallthru
        _
      // Predicated region
      $region33: #{hunet_up_block.1} parent=11 // pred_check
        %p248 = pneg %p192
      $region34: #{hunet_up_block.1} parent=11 // pred_check_branch
        %250 = sbr.rel (%p248) target = $region36
      $region35: #{hunet_up_block.1} parent=11 // pred_region
        _
      $region36: #{hunet_up_block.1} parent=11 // pred_fallthru
        _
    $region12: #{hunet_up_block.1} parent=5 // pred_fallthru
      _
    %p251 = scmp.lt.s32.totalorder %s14, 2
    // Predicated region
    $region37: #{hunet_up_block.1} parent=5 // pred_check
      %p252 = pneg %p251
    $region38: #{hunet_up_block.1} parent=5 // pred_check_branch
      %254 = sbr.rel (%p252) target = $region40
    $region39: #{hunet_up_block.1} parent=5 // pred_region
      // Predicated region
      $region41: #{hunet_up_block.1} parent=39 // pred_check
        %p255 = pneg %p34
      $region42: #{hunet_up_block.1} parent=39 // pred_check_branch
        %257 = sbr.rel (%p255) target = $region44
      $region43: #{hunet_up_block.1} parent=39 // pred_region
        %p258 = scmp.lt.s32.totalorder %s14, 1
        %s259 = scalar_select %p258, %s14, 1
        %s260 = smul.addr %s259, 8
        %s261 = scalar_lea.vmem %s0, %s260
      $region44: #{hunet_up_block.1} parent=39 // pred_fallthru
        _
      // Predicated region
      $region45: #{hunet_up_block.1} parent=39 // pred_check
        %p262 = pneg %p60
      $region46: #{hunet_up_block.1} parent=39 // pred_check_branch
        %264 = sbr.rel (%p262) target = $region48
      $region47: #{hunet_up_block.1} parent=39 // pred_region
        %p265 = scmp.lt.s32.totalorder %s14, 1
        %s266 = scalar_select %p265, %s14, 1
        %s267 = smul.addr %s266, 2
        %s268 = smul.addr %s267, 8
        %s269 = scalar_lea.vmem %s1, %s268
      $region48: #{hunet_up_block.1} parent=39 // pred_fallthru
        _
    $region40: #{hunet_up_block.1} parent=5 // pred_fallthru
      _
    %p270 = scmp.le.s32.totalorder 1, %s14
    %p271 = scmp.lt.s32.totalorder %s14, 3
    %p272 = pnand %p270, %p271
    %p273 = pneg %p272
    // Predicated region
    $region49: #{hunet_up_block.1} parent=5 // pred_check
      _
    $region50: #{hunet_up_block.1} parent=5 // pred_check_branch
      %275 = sbr.rel (%p272) target = $region52
    $region51: #{hunet_up_block.1} parent=5 // pred_region
      %s276 = ssub.s32 %s14, 1
      %p277 = scmp.lt.s32.totalorder %s19, 1
      %s278 = scalar_select %p277, %s19, 1
      %s279 = smul.addr %s278, 8
      %s280 = scalar_lea.vmem %s0, %s279
      %p281 = pneg %p40
      %p282 = pneg %p37
      %p283 = scmp.lt.s32.totalorder %s19, 1
      %s284 = scalar_select %p283, %s19, 1
      %s285 = smul.addr %s284, 2
      %s286 = smul.addr %s285, 8
      %s287 = scalar_lea.vmem %s1, %s286
      %p288 = pneg %p66
      %p289 = pneg %p63
      %p290 = pneg %p87
      %p291 = pneg %p84
      %p292 = pneg %p108
      %p293 = pneg %p105
      %p294 = pneg %p129
      %p295 = pneg %p126
      %p296 = pneg %p150
      %p297 = pneg %p147
      %p298 = pneg %p171
      %p299 = pneg %p168
      %p300 = pneg %p192
      %p301 = pneg %p189
      %p302 = pneg %p218
      %p303 = pneg %p215
      %p304 = scmp.lt.s32.totalorder %s19, 1
      %s305 = scalar_select %p304, %s19, 1
      %s306 = smul.addr %s305, 2
      %s307 = smul.addr %s306, 8
      %s308 = scalar_lea.vmem %s8, %s307
      %p309 = scmp.lt.s32.totalorder %s19, 1
      %s310 = scalar_select %p309, %s19, 1
      %s311 = smul.addr %s310, 8
      %s312 = scalar_lea.vmem %s0, %s311
      %p313 = scmp.lt.s32.totalorder %s19, 1
      %s314 = scalar_select %p313, %s19, 1
      %s315 = smul.addr %s314, 2
      %s316 = smul.addr %s315, 8
      %s317 = scalar_lea.vmem %s1, %s316
      %p318 = scmp.lt.s32.totalorder %s19, 1
      %s319 = scalar_select %p318, %s19, 1
      %s320 = smul.addr %s319, 2
      %s321 = smul.addr %s320, 8
      %s322 = scalar_lea.vmem %s8, %s321
      %v323 = vld [vmem:[%s312] sm:$0xff]
      %v324 = vld [vmem:[%s2] sm:$0xff]
      %v325 = vld [vmem:[%s2 + $0x8] sm:$0xff]
      %v326 = vld [vmem:[%s2 + $0x10] sm:$0xff]
      %v327 = vld [vmem:[%s2 + $0x18] sm:$0xff]
      %v328 = vld [vmem:[%s2 + $0x20] sm:$0xff]
      %v329 = vld [vmem:[%s2 + $0x28] sm:$0xff]
      %v330 = vld [vmem:[%s2 + $0x30] sm:$0xff]
      %v331 = vld [vmem:[%s2 + $0x38] sm:$0xff]
      %vm332 = vcmask 523264
      %v334 = vsel %vm332, %v323, 0
      %336 = vmatpush.msra.mxu0 0.0
      %337 = vmatpush.msra.mxu0 0.0
      %338 = vmatpush.msra.mxu0 0.0
      %339 = vmatpush.msra.mxu0 0.0
      %340 = vmatpush.msra.mxu0 0.0
      %341 = vmatpush.msra.mxu0 0.0
      %342 = vmatpush.msra.mxu0 0.0
      %343 = vmatpush.msra.mxu0 0.0
      %344 = vmatpush.msra.mxu0 %v331
      %345 = vmatpush.msra.mxu0 %v330
      %346 = vmatpush.msra.mxu0 %v329
      %347 = vmatpush.msra.mxu0 %v328
      %348 = vmatpush.msra.mxu0 %v327
      %349 = vmatpush.msra.mxu0 %v326
      %350 = vmatpush.msra.mxu0 %v325
      %351 = vmatpush.msra.mxu0 %v324
      %352 = vmatmul.f32.gmra.mxu0 %v334
      %v353 = vpop.f32.mrf.mxu0
      %v354 = vadd.f32 0.0, %v353
      %355 = vdwg.mxu0
      %s356 = scalar_lea.vmem %s2, 64
      %v357 = vld [vmem:[%s356] sm:$0xff]
      %v358 = vld [vmem:[%s356 + $0x8] sm:$0xff]
      %v359 = vld [vmem:[%s356 + $0x10] sm:$0xff]
      %v360 = vld [vmem:[%s356 + $0x18] sm:$0xff]
      %v361 = vld [vmem:[%s356 + $0x20] sm:$0xff]
      %v362 = vld [vmem:[%s356 + $0x28] sm:$0xff]
      %v363 = vld [vmem:[%s356 + $0x30] sm:$0xff]
      %v364 = vld [vmem:[%s356 + $0x38] sm:$0xff]
      %365 = vmatpush.msra.mxu0 0.0
      %366 = vmatpush.msra.mxu0 0.0
      %367 = vmatpush.msra.mxu0 0.0
      %368 = vmatpush.msra.mxu0 0.0
      %369 = vmatpush.msra.mxu0 0.0
      %370 = vmatpush.msra.mxu0 0.0
      %371 = vmatpush.msra.mxu0 0.0
      %372 = vmatpush.msra.mxu0 0.0
      %373 = vmatpush.msra.mxu0 %v364
      %374 = vmatpush.msra.mxu0 %v363
      %375 = vmatpush.msra.mxu0 %v362
      %376 = vmatpush.msra.mxu0 %v361
      %377 = vmatpush.msra.mxu0 %v360
      %378 = vmatpush.msra.mxu0 %v359
      %379 = vmatpush.msra.mxu0 %v358
      %380 = vmatpush.msra.mxu0 %v357
      %381 = vmatmul.f32.gmra.mxu0 %v334
      %v382 = vpop.f32.mrf.mxu0
      %v383 = vadd.f32 0.0, %v382
      %384 = vdwg.mxu0
      %v385 = vld [vmem:[%s3] sm:$0xff]
      %v386 = vld [vmem:[%s3 + $0x8] sm:$0xff]
      %v387 = vld [vmem:[%s4] sm:$0xff]
      %v388 = vld [vmem:[%s4 + $0x8] sm:$0xff]
      %vm389 = vcmask 64512
      %v391 = vsel %vm389, %v387, 0
      %v394 = vsel %vm389, %v388, 0
      %396 = vmatpush.msra.mxu0 0.0
      %397 = vmatpush.msra.mxu0 0.0
      %398 = vmatpush.msra.mxu0 0.0
      %399 = vmatpush.msra.mxu0 0.0
      %400 = vmatpush.msra.mxu0 0.0
      %401 = vmatpush.msra.mxu0 0.0
      %402 = vmatpush.msra.mxu0 0.0
      %403 = vmatpush.msra.mxu0 0.0
      %404 = vmatpush.msra.mxu0 0.0
      %405 = vmatpush.msra.mxu0 0.0
      %406 = vmatpush.msra.mxu0 0.0
      %407 = vmatpush.msra.mxu0 0.0
      %408 = vmatpush.msra.mxu0 0.0
      %409 = vmatpush.msra.mxu0 0.0
      %410 = vmatpush.msra.mxu0 0.0
      %411 = vmatpush.msra.mxu0 %v383
      %412 = vmatmul.f32.gmra.mxu0 %v391
      %v413 = vpop.f32.mrf.mxu0
      %v414 = vadd.f32 0.0, %v413
      %415 = vmatmul.f32.gmra.mxu0 %v394
      %v416 = vpop.f32.mrf.mxu0
      %v417 = vadd.f32 0.0, %v416
      %418 = vdwg.mxu0
      %v420 = vsel %vm389, %v385, 0
      %v423 = vsel %vm389, %v386, 0
      %425 = vmatpush.msra.mxu0 0.0
      %426 = vmatpush.msra.mxu0 0.0
      %427 = vmatpush.msra.mxu0 0.0
      %428 = vmatpush.msra.mxu0 0.0
      %429 = vmatpush.msra.mxu0 0.0
      %430 = vmatpush.msra.mxu0 0.0
      %431 = vmatpush.msra.mxu0 0.0
      %432 = vmatpush.msra.mxu0 0.0
      %433 = vmatpush.msra.mxu0 0.0
      %434 = vmatpush.msra.mxu0 0.0
      %435 = vmatpush.msra.mxu0 0.0
      %436 = vmatpush.msra.mxu0 0.0
      %437 = vmatpush.msra.mxu0 0.0
      %438 = vmatpush.msra.mxu0 0.0
      %439 = vmatpush.msra.mxu0 0.0
      %440 = vmatpush.msra.mxu0 %v354
      %441 = vmatmul.f32.gmra.mxu0 %v420
      %v442 = vpop.f32.mrf.mxu0
      %v443 = vadd.f32 %v414, %v442
      %444 = vmatmul.f32.gmra.mxu0 %v423
      %v445 = vpop.f32.mrf.mxu0
      %v446 = vadd.f32 %v417, %v445
      %447 = vdwg.mxu0
      %v448 = vld [vmem:[%s317] sm:$0xff]
      %v449 = vld [vmem:[%s317 + $0x8] sm:$0xff]
      %v450 = vld [vmem:[%s5] sm:$0xff]
      %v451 = vld [vmem:[%s5 + $0x8] sm:$0xff]
      %v452 = vld [vmem:[%s5 + $0x10] sm:$0xff]
      %v453 = vld [vmem:[%s5 + $0x18] sm:$0xff]
      %v454 = vld [vmem:[%s5 + $0x20] sm:$0xff]
      %v455 = vld [vmem:[%s5 + $0x28] sm:$0xff]
      %v456 = vld [vmem:[%s5 + $0x30] sm:$0xff]
      %v457 = vld [vmem:[%s5 + $0x38] sm:$0xff]
      %v458 = vld [vmem:[%s5 + $0x40] sm:$0xff]
      %v459 = vld [vmem:[%s5 + $0x48] sm:$0xff]
      %vm460 = vcmask 654336
      %v462 = vsel %vm460, %v448, 0
      %v465 = vsel %vm460, %v449, 0
      %467 = vmatpush.msra.mxu0 0.0
      %468 = vmatpush.msra.mxu0 0.0
      %469 = vmatpush.msra.mxu0 0.0
      %470 = vmatpush.msra.mxu0 0.0
      %471 = vmatpush.msra.mxu0 0.0
      %472 = vmatpush.msra.mxu0 0.0
      %473 = vmatpush.msra.mxu0 %v459
      %474 = vmatpush.msra.mxu0 %v458
      %475 = vmatpush.msra.mxu0 %v457
      %476 = vmatpush.msra.mxu0 %v456
      %477 = vmatpush.msra.mxu0 %v455
      %478 = vmatpush.msra.mxu0 %v454
      %479 = vmatpush.msra.mxu0 %v453
      %480 = vmatpush.msra.mxu0 %v452
      %481 = vmatpush.msra.mxu0 %v451
      %482 = vmatpush.msra.mxu0 %v450
      %483 = vmatmul.f32.gmra.mxu0 %v462
      %v484 = vpop.f32.mrf.mxu0
      %v485 = vadd.f32 0.0, %v484
      %486 = vmatmul.f32.gmra.mxu0 %v465
      %v487 = vpop.f32.mrf.mxu0
      %v488 = vadd.f32 0.0, %v487
      %489 = vdwg.mxu0
      %v490 = vadd.f32 %v443, %v485
      %v491 = vadd.f32 %v446, %v488
      %492 = vst [vmem:[#allocation2] sm:$0x1] 0.0
      %493 = vst [vmem:[#allocation2 + $0x11] sm:$0x1] 0.0
      %494 = vst [vmem:[#allocation2 + $0x1] sm:$0xff] %v490
      %495 = vst [vmem:[#allocation2 + $0x9] sm:$0xff] %v491
      %v496 = vld [vmem:[#allocation2] sm:$0xff]
      %v497 = vld [vmem:[#allocation2 + $0x8] sm:$0xff]
      %v498 = vld [vmem:[%s6] sm:$0xff]
      %v499 = vld [vmem:[%s6 + $0x8] sm:$0xff]
      %v500 = vld [vmem:[%s6 + $0x10] sm:$0xff]
      %v501 = vld [vmem:[%s6 + $0x18] sm:$0xff]
      %v502 = vld [vmem:[%s6 + $0x20] sm:$0xff]
      %v503 = vld [vmem:[%s6 + $0x28] sm:$0xff]
      %v504 = vld [vmem:[%s6 + $0x30] sm:$0xff]
      %v505 = vld [vmem:[%s6 + $0x38] sm:$0xff]
      %v506 = vld [vmem:[%s6 + $0x40] sm:$0xff]
      %v507 = vld [vmem:[%s6 + $0x48] sm:$0xff]
      %v508 = vld [vmem:[%s6 + $0x50] sm:$0xff]
      %v509 = vld [vmem:[%s6 + $0x58] sm:$0xff]
      %v510 = vld [vmem:[%s6 + $0x60] sm:$0xff]
      %v511 = vld [vmem:[%s6 + $0x68] sm:$0xff]
      %v512 = vld [vmem:[%s6 + $0x70] sm:$0xff]
      %v513 = vld [vmem:[%s6 + $0x78] sm:$0xff]
      %v514 = vld [vmem:[#allocation2 + $0x1] sm:$0xff]
      %v515 = vld [vmem:[#allocation2 + $0x9] sm:$0xff]
      %s516 = scalar_lea.vmem %s6, 128
      %v517 = vld [vmem:[%s516] sm:$0xff]
      %v518 = vld [vmem:[%s516 + $0x8] sm:$0xff]
      %v519 = vld [vmem:[%s516 + $0x10] sm:$0xff]
      %v520 = vld [vmem:[%s516 + $0x18] sm:$0xff]
      %v521 = vld [vmem:[%s516 + $0x20] sm:$0xff]
      %v522 = vld [vmem:[%s516 + $0x28] sm:$0xff]
      %v523 = vld [vmem:[%s516 + $0x30] sm:$0xff]
      %v524 = vld [vmem:[%s516 + $0x38] sm:$0xff]
      %v525 = vld [vmem:[%s516 + $0x40] sm:$0xff]
      %v526 = vld [vmem:[%s516 + $0x48] sm:$0xff]
      %v527 = vld [vmem:[%s516 + $0x50] sm:$0xff]
      %v528 = vld [vmem:[%s516 + $0x58] sm:$0xff]
      %v529 = vld [vmem:[%s516 + $0x60] sm:$0xff]
      %v530 = vld [vmem:[%s516 + $0x68] sm:$0xff]
      %v531 = vld [vmem:[%s516 + $0x70] sm:$0xff]
      %v532 = vld [vmem:[%s516 + $0x78] sm:$0xff]
      %533 = vmatpush.msra.mxu0 %v532
      %534 = vmatpush.msra.mxu0 %v531
      %535 = vmatpush.msra.mxu0 %v530
      %536 = vmatpush.msra.mxu0 %v529
      %537 = vmatpush.msra.mxu0 %v528
      %538 = vmatpush.msra.mxu0 %v527
      %539 = vmatpush.msra.mxu0 %v526
      %540 = vmatpush.msra.mxu0 %v525
      %541 = vmatpush.msra.mxu0 %v524
      %542 = vmatpush.msra.mxu0 %v523
      %543 = vmatpush.msra.mxu0 %v522
      %544 = vmatpush.msra.mxu0 %v521
      %545 = vmatpush.msra.mxu0 %v520
      %546 = vmatpush.msra.mxu0 %v519
      %547 = vmatpush.msra.mxu0 %v518
      %548 = vmatpush.msra.mxu0 %v517
      %549 = vmatmul.f32.gmra.mxu0 %v514
      %v550 = vpop.f32.mrf.mxu0
      %v551 = vadd.f32 0.0, %v550
      %552 = vmatmul.f32.gmra.mxu0 %v515
      %v553 = vpop.f32.mrf.mxu0
      %v554 = vadd.f32 0.0, %v553
      %555 = vdwg.mxu0
      %556 = vmatpush.msra.mxu0 %v513
      %557 = vmatpush.msra.mxu0 %v512
      %558 = vmatpush.msra.mxu0 %v511
      %559 = vmatpush.msra.mxu0 %v510
      %560 = vmatpush.msra.mxu0 %v509
      %561 = vmatpush.msra.mxu0 %v508
      %562 = vmatpush.msra.mxu0 %v507
      %563 = vmatpush.msra.mxu0 %v506
      %564 = vmatpush.msra.mxu0 %v505
      %565 = vmatpush.msra.mxu0 %v504
      %566 = vmatpush.msra.mxu0 %v503
      %567 = vmatpush.msra.mxu0 %v502
      %568 = vmatpush.msra.mxu0 %v501
      %569 = vmatpush.msra.mxu0 %v500
      %570 = vmatpush.msra.mxu0 %v499
      %571 = vmatpush.msra.mxu0 %v498
      %572 = vmatmul.f32.gmra.mxu0 %v496
      %v573 = vpop.f32.mrf.mxu0
      %v574 = vadd.f32 %v551, %v573
      %575 = vmatmul.f32.gmra.mxu0 %v497
      %v576 = vpop.f32.mrf.mxu0
      %v577 = vadd.f32 %v554, %v576
      %578 = vdwg.mxu0
      %v579 = vld [vmem:[#allocation2 + $0x2] sm:$0xff]
      %v580 = vld [vmem:[#allocation2 + $0xa] sm:$0xff]
      %s581 = scalar_lea.vmem %s6, 256
      %v582 = vld [vmem:[%s581] sm:$0xff]
      %v583 = vld [vmem:[%s581 + $0x8] sm:$0xff]
      %v584 = vld [vmem:[%s581 + $0x10] sm:$0xff]
      %v585 = vld [vmem:[%s581 + $0x18] sm:$0xff]
      %v586 = vld [vmem:[%s581 + $0x20] sm:$0xff]
      %v587 = vld [vmem:[%s581 + $0x28] sm:$0xff]
      %v588 = vld [vmem:[%s581 + $0x30] sm:$0xff]
      %v589 = vld [vmem:[%s581 + $0x38] sm:$0xff]
      %v590 = vld [vmem:[%s581 + $0x40] sm:$0xff]
      %v591 = vld [vmem:[%s581 + $0x48] sm:$0xff]
      %v592 = vld [vmem:[%s581 + $0x50] sm:$0xff]
      %v593 = vld [vmem:[%s581 + $0x58] sm:$0xff]
      %v594 = vld [vmem:[%s581 + $0x60] sm:$0xff]
      %v595 = vld [vmem:[%s581 + $0x68] sm:$0xff]
      %v596 = vld [vmem:[%s581 + $0x70] sm:$0xff]
      %v597 = vld [vmem:[%s581 + $0x78] sm:$0xff]
      %598 = vmatpush.msra.mxu0 %v597
      %599 = vmatpush.msra.mxu0 %v596
      %600 = vmatpush.msra.mxu0 %v595
      %601 = vmatpush.msra.mxu0 %v594
      %602 = vmatpush.msra.mxu0 %v593
      %603 = vmatpush.msra.mxu0 %v592
      %604 = vmatpush.msra.mxu0 %v591
      %605 = vmatpush.msra.mxu0 %v590
      %606 = vmatpush.msra.mxu0 %v589
      %607 = vmatpush.msra.mxu0 %v588
      %608 = vmatpush.msra.mxu0 %v587
      %609 = vmatpush.msra.mxu0 %v586
      %610 = vmatpush.msra.mxu0 %v585
      %611 = vmatpush.msra.mxu0 %v584
      %612 = vmatpush.msra.mxu0 %v583
      %613 = vmatpush.msra.mxu0 %v582
      %614 = vmatmul.f32.gmra.mxu0 %v579
      %v615 = vpop.f32.mrf.mxu0
      %v616 = vadd.f32 0.0, %v615
      %617 = vmatmul.f32.gmra.mxu0 %v580
      %v618 = vpop.f32.mrf.mxu0
      %v619 = vadd.f32 0.0, %v618
      %620 = vdwg.mxu0
      %v621 = vadd.f32 %v574, %v616
      %v622 = vadd.f32 %v577, %v619
      %v623 = vmax.f32 %v621, 0.0
      %v624 = vmax.f32 %v622, 0.0
      %vm625 = vcmask 516096
      %626 = vst.msk [vmem:[#allocation3] sm:$0x1] %vm625, 0.0
      %627 = vst.msk [vmem:[#allocation3 + $0x11] sm:$0x1] %vm625, 0.0
      %628 = vst.msk [vmem:[#allocation3 + $0x1] sm:$0xff] %vm332, %v623
      %629 = vst.msk [vmem:[#allocation3 + $0x9] sm:$0xff] %vm332, %v624
      %v630 = vld [vmem:[#allocation3] sm:$0xff]
      %v631 = vld [vmem:[#allocation3 + $0x8] sm:$0xff]
      %v632 = vld [vmem:[%s7] sm:$0xff]
      %v633 = vld [vmem:[%s7 + $0x8] sm:$0xff]
      %v634 = vld [vmem:[%s7 + $0x10] sm:$0xff]
      %v635 = vld [vmem:[%s7 + $0x18] sm:$0xff]
      %v636 = vld [vmem:[%s7 + $0x20] sm:$0xff]
      %v637 = vld [vmem:[%s7 + $0x28] sm:$0xff]
      %v638 = vld [vmem:[%s7 + $0x30] sm:$0xff]
      %v639 = vld [vmem:[%s7 + $0x38] sm:$0xff]
      %v640 = vld [vmem:[#allocation3 + $0x1] sm:$0xff]
      %v641 = vld [vmem:[#allocation3 + $0x9] sm:$0xff]
      %s642 = scalar_lea.vmem %s7, 64
      %v643 = vld [vmem:[%s642] sm:$0xff]
      %v644 = vld [vmem:[%s642 + $0x8] sm:$0xff]
      %v645 = vld [vmem:[%s642 + $0x10] sm:$0xff]
      %v646 = vld [vmem:[%s642 + $0x18] sm:$0xff]
      %v647 = vld [vmem:[%s642 + $0x20] sm:$0xff]
      %v648 = vld [vmem:[%s642 + $0x28] sm:$0xff]
      %v649 = vld [vmem:[%s642 + $0x30] sm:$0xff]
      %v650 = vld [vmem:[%s642 + $0x38] sm:$0xff]
      %v652 = vsel %vm332, %v640, 0
      %v655 = vsel %vm332, %v641, 0
      %657 = vmatpush.msra.mxu0 0.0
      %658 = vmatpush.msra.mxu0 0.0
      %659 = vmatpush.msra.mxu0 0.0
      %660 = vmatpush.msra.mxu0 0.0
      %661 = vmatpush.msra.mxu0 0.0
      %662 = vmatpush.msra.mxu0 0.0
      %663 = vmatpush.msra.mxu0 0.0
      %664 = vmatpush.msra.mxu0 0.0
      %665 = vmatpush.msra.mxu0 %v650
      %666 = vmatpush.msra.mxu0 %v649
      %667 = vmatpush.msra.mxu0 %v648
      %668 = vmatpush.msra.mxu0 %v647
      %669 = vmatpush.msra.mxu0 %v646
      %670 = vmatpush.msra.mxu0 %v645
      %671 = vmatpush.msra.mxu0 %v644
      %672 = vmatpush.msra.mxu0 %v643
      %673 = vmatmul.f32.gmra.mxu0 %v652
      %v674 = vpop.f32.mrf.mxu0
      %v675 = vadd.f32 0.0, %v674
      %676 = vmatmul.f32.gmra.mxu0 %v655
      %v677 = vpop.f32.mrf.mxu0
      %v678 = vadd.f32 0.0, %v677
      %679 = vdwg.mxu0
      %v681 = vsel %vm332, %v630, 0
      %v684 = vsel %vm332, %v631, 0
      %686 = vmatpush.msra.mxu0 0.0
      %687 = vmatpush.msra.mxu0 0.0
      %688 = vmatpush.msra.mxu0 0.0
      %689 = vmatpush.msra.mxu0 0.0
      %690 = vmatpush.msra.mxu0 0.0
      %691 = vmatpush.msra.mxu0 0.0
      %692 = vmatpush.msra.mxu0 0.0
      %693 = vmatpush.msra.mxu0 0.0
      %694 = vmatpush.msra.mxu0 %v639
      %695 = vmatpush.msra.mxu0 %v638
      %696 = vmatpush.msra.mxu0 %v637
      %697 = vmatpush.msra.mxu0 %v636
      %698 = vmatpush.msra.mxu0 %v635
      %699 = vmatpush.msra.mxu0 %v634
      %700 = vmatpush.msra.mxu0 %v633
      %701 = vmatpush.msra.mxu0 %v632
      %702 = vmatmul.f32.gmra.mxu0 %v681
      %v703 = vpop.f32.mrf.mxu0
      %v704 = vadd.f32 %v675, %v703
      %705 = vmatmul.f32.gmra.mxu0 %v684
      %v706 = vpop.f32.mrf.mxu0
      %v707 = vadd.f32 %v678, %v706
      %708 = vdwg.mxu0
      %v709 = vld [vmem:[#allocation3 + $0x2] sm:$0xff]
      %v710 = vld [vmem:[#allocation3 + $0xa] sm:$0xff]
      %s711 = scalar_lea.vmem %s7, 128
      %v712 = vld [vmem:[%s711] sm:$0xff]
      %v713 = vld [vmem:[%s711 + $0x8] sm:$0xff]
      %v714 = vld [vmem:[%s711 + $0x10] sm:$0xff]
      %v715 = vld [vmem:[%s711 + $0x18] sm:$0xff]
      %v716 = vld [vmem:[%s711 + $0x20] sm:$0xff]
      %v717 = vld [vmem:[%s711 + $0x28] sm:$0xff]
      %v718 = vld [vmem:[%s711 + $0x30] sm:$0xff]
      %v719 = vld [vmem:[%s711 + $0x38] sm:$0xff]
      %v721 = vsel %vm332, %v709, 0
      %v724 = vsel %vm332, %v710, 0
      %726 = vmatpush.msra.mxu0 0.0
      %727 = vmatpush.msra.mxu0 0.0
      %728 = vmatpush.msra.mxu0 0.0
      %729 = vmatpush.msra.mxu0 0.0
      %730 = vmatpush.msra.mxu0 0.0
      %731 = vmatpush.msra.mxu0 0.0
      %732 = vmatpush.msra.mxu0 0.0
      %733 = vmatpush.msra.mxu0 0.0
      %734 = vmatpush.msra.mxu0 %v719
      %735 = vmatpush.msra.mxu0 %v718
      %736 = vmatpush.msra.mxu0 %v717
      %737 = vmatpush.msra.mxu0 %v716
      %738 = vmatpush.msra.mxu0 %v715
      %739 = vmatpush.msra.mxu0 %v714
      %740 = vmatpush.msra.mxu0 %v713
      %741 = vmatpush.msra.mxu0 %v712
      %742 = vmatmul.f32.gmra.mxu0 %v721
      %v743 = vpop.f32.mrf.mxu0
      %v744 = vadd.f32 0.0, %v743
      %745 = vmatmul.f32.gmra.mxu0 %v724
      %v746 = vpop.f32.mrf.mxu0
      %v747 = vadd.f32 0.0, %v746
      %748 = vdwg.mxu0
      %v749 = vadd.f32 %v704, %v744
      %v750 = vadd.f32 %v707, %v747
      %v751 = vmax.f32 %v749, 0.0
      %v752 = vmax.f32 %v750, 0.0
      %753 = vst.msk [vmem:[%s322] sm:$0xff] %vm332, %v751
      %754 = vst.msk [vmem:[%s322 + $0x8] sm:$0xff] %vm332, %v752
      %p755 = scmp.lt.s32.totalorder %s19, 1
      %s756 = scalar_select %p755, %s19, 1
      %s757 = smul.addr %s756, 2
      %s758 = smul.addr %s757, 8
      %s759 = scalar_lea.vmem %s8, %s758
      // Predicated region
      $region53: #{hunet_up_block.1} parent=51 // pred_check
        %p760 = pneg %p215
      $region54: #{hunet_up_block.1} parent=51 // pred_check_branch
        %762 = sbr.rel (%p760) target = $region56
      $region55: #{hunet_up_block.1} parent=51 // pred_region
        _
      $region56: #{hunet_up_block.1} parent=51 // pred_fallthru
        _
    $region52: #{hunet_up_block.1} parent=5 // pred_fallthru
      _
    %p763 = scmp.le.s32.totalorder 2, %s14
    // Predicated region
    $region57: #{hunet_up_block.1} parent=5 // pred_check
      %p764 = pneg %p763
    $region58: #{hunet_up_block.1} parent=5 // pred_check_branch
      %766 = sbr.rel (%p764) target = $region60
    $region59: #{hunet_up_block.1} parent=5 // pred_region
      %s767 = ssub.s32 %s14, 2
      // Predicated region
      $region61: #{hunet_up_block.1} parent=59 // pred_check
        %p768 = pneg %p221
      $region62: #{hunet_up_block.1} parent=59 // pred_check_branch
        %770 = sbr.rel (%p768) target = $region64
      $region63: #{hunet_up_block.1} parent=59 // pred_region
        %p771 = scmp.lt.s32.totalorder %s20, 1
        %s772 = scalar_select %p771, %s20, 1
        %s773 = smul.addr %s772, 2
        %s774 = smul.addr %s773, 8
        %s775 = scalar_lea.vmem %s8, %s774
      $region64: #{hunet_up_block.1} parent=59 // pred_fallthru
        _
    $region60: #{hunet_up_block.1} parent=5 // pred_fallthru
      _
  $region6: #{hunet_up_block.1} parent=0 // loop_footer
    %s18 = sadd.s32 1, %s14
  $region7: #{hunet_up_block.1} parent=0 // loop_footer_branch
    %13 = sbr.rel target = $region3
  $region8: #{hunet_up_block.1} parent=0 // loop_exit
    _

</llo_original>
